<compile_context>
chip_gen: v7x
topology: tpu7x:2x2x1
jax: 0.10.0
libtpu: 0.0.40
codegen_flags: <defaults>
</compile_context>

<pallas_src>
import functools
import math

import jax
import jax.numpy as jnp
from jax.experimental import pallas as pl
from jax.experimental.pallas import tpu as pltpu


# ---------------------------------------------------------------------------
# Generation-aware VMEM budget
# ---------------------------------------------------------------------------
@functools.lru_cache(maxsize=1)
def _vmem_limit_bytes():
    cap = None
    try:
        info = pltpu.get_tpu_info()
        cap = getattr(info, "vmem_capacity_bytes", None)
    except Exception:
        cap = None
    if not cap:
        cap = 64 * 1024 * 1024          # conservative: v7x physical VMEM per TC
    # Leave headroom for Mosaic-internal scratch; ~100 MiB on 128-MiB parts, ~50 MiB on v7x.
    return min(int(cap * 0.78), 100 * 1024 * 1024)


def _divisor_tiles(n, preferred):
    tiles = [t for t in preferred if n % t == 0]
    return tiles if tiles else [n]


def _proj_tile_n(N, Cin, Ctot, itemsize, budget):
    """Largest sequence tile for the projection kernel that fits the VMEM budget."""
    for t in _divisor_tiles(N, (2048, 1024, 512, 256, 128, 64, 32, 16, 8)):
        use = 2 * t * Cin * itemsize          # x tile (double-buffered)
        use += 2 * Cin * Ctot * itemsize      # wide weight (double-buffered)
        use += 2 * t * Ctot * itemsize        # all outputs (double-buffered)
        use += t * Ctot * 4                   # f32 matmul result
        if use <= budget:
            return t
    return _divisor_tiles(N, (2048, 1024, 512, 256, 128, 64, 32, 16, 8))[-1]


def _attn_tile_q(B, Nq, Nk, C, n_head, itemsize, need_attn, budget):
    """VMEM-budget-driven q-tile; keeps >=2 q tiles when B == 1 (megacore sharding)."""
    cands = _divisor_tiles(Nq, (512, 256, 128, 64, 32, 16, 8))
    if B == 1:
        pref = [t for t in cands if Nq // t >= 2] or cands
    else:
        pref = cands
    for t in pref:
        use = 3 * 2 * t * C * itemsize        # q, residual, out tiles (double-buffered)
        use += 2 * Nk * C * itemsize          # K + V (single-buffered, Buffered(1))
        use += C * C * itemsize               # fc weight (single-buffered)
        use += t * C * 4                      # merged-head f32 result
        use += 3 * t * Nk * 4                 # softmax temporaries s/e/p (f32)
        if need_attn:
            use += 2 * n_head * t * Nk * itemsize   # attn output block (double-buffered)
        if use <= budget:
            return t
    return pref[-1]


# ---------------------------------------------------------------------------
# Kernel 1: fused wide projection  y = x @ W_wide, written as per-output lane slices
# ---------------------------------------------------------------------------
def _make_proj_kernel(out_channels):
    def kernel(x_ref, w_ref, *o_refs):
        x = x_ref[0]                                                   # (TN, Cin)
        y = jnp.dot(x, w_ref[...], preferred_element_type=jnp.float32)  # (TN, sum(Cout))
        off = 0
        for o_ref, c in zip(o_refs, out_channels):
            o_ref[0] = y[:, off:off + c].astype(o_ref.dtype)
            off += c
    return kernel


def fused_linear(x, w_wide, out_channels, *, tile_n=None):
    """x: (B, N, Cin); w_wide: (Cin, sum(out_channels)) -> one (B, N, c) per out channel."""
    B, N, Cin = x.shape
    out_channels = tuple(int(c) for c in out_channels)
    Ctot = w_wide.shape[-1]
    assert Ctot == sum(out_channels)
    itemsize = jnp.dtype(x.dtype).itemsize
    limit = _vmem_limit_bytes()
    TN = tile_n or _proj_tile_n(N, Cin, Ctot, itemsize, int(limit * 0.75))
    grid = (B, N // TN)

    outs = pl.pallas_call(
        _make_proj_kernel(out_channels),
        out_shape=tuple(jax.ShapeDtypeStruct((B, N, c), x.dtype) for c in out_channels),
        grid=grid,
        in_specs=[
            pl.BlockSpec((1, TN, Cin), lambda b, i: (b, i, 0)),
            pl.BlockSpec((Cin, Ctot), lambda b, i: (0, 0)),
        ],
        out_specs=tuple(pl.BlockSpec((1, TN, c), lambda b, i: (b, i, 0))
                        for c in out_channels),
        compiler_params=pltpu.CompilerParams(
            dimension_semantics=("parallel", "parallel"),
            vmem_limit_bytes=limit),
    )(x, w_wide)
    if not isinstance(outs, (tuple, list)):
        outs = (outs,)
    return tuple(outs)


# ---------------------------------------------------------------------------
# Kernel 2: fused multi-head attention + output projection + residual
#   heads live on the channel axis (C = H*D) and are sliced in-kernel;
#   1/temperature is already folded into the q projection.
# ---------------------------------------------------------------------------
def _attn_body(q_ref, k_ref, v_ref, w_ref, r_ref, o_ref, a_ref, *, n_head):
    q = q_ref[0]                                   # (TQ, C)  (already scaled by 1/temp)
    k = k_ref[0]                                   # (Nk, C)
    v = v_ref[0]                                   # (Nk, C)
    C = q.shape[-1]
    D = C // n_head

    heads = []
    for h in range(n_head):                        # static loop, static lane slices
        lo = h * D
        qh = q[:, lo:lo + D]                       # (TQ, D)
        kh = k[:, lo:lo + D]                       # (Nk, D)
        vh = v[:, lo:lo + D]                       # (Nk, D)

        # scores: q @ k^T (contract head dims), f32 accumulation on the MXU.
        # TODO(synk): if the bundle dump shows per-head vxpose of kh, feed K pre-transposed
        #             (B, C, Nk) from the projection kernel instead.
        s = jax.lax.dot_general(qh, kh, (((1,), (1,)), ((), ())),
                                preferred_element_type=jnp.float32)
        s = s - jnp.max(s, axis=-1, keepdims=True)
        e = jnp.exp(s)
        # approximate reciprocal runs on the EUP slot (free vs busy VALU slots)
        p = e * pl.reciprocal(jnp.sum(e, axis=-1, keepdims=True), approx=True)

        if a_ref is not None:
            a_ref[0, h] = p.astype(a_ref.dtype)

        heads.append(jnp.dot(p.astype(vh.dtype), vh,
                             preferred_element_type=jnp.float32))   # (TQ, D) f32

    # epilogue: merged heads (kept in vregs) @ fc + residual
    merged = jnp.concatenate(heads, axis=-1)       # (TQ, C) f32
    y = jnp.dot(merged.astype(w_ref.dtype), w_ref[...],
                preferred_element_type=jnp.float32)
    y = y + r_ref[0].astype(jnp.float32)
    o_ref[0] = y.astype(o_ref.dtype)


def _attn_kernel_with_attn(q_ref, k_ref, v_ref, w_ref, r_ref, o_ref, a_ref, *, n_head):
    _attn_body(q_ref, k_ref, v_ref, w_ref, r_ref, o_ref, a_ref, n_head=n_head)


def _attn_kernel_no_attn(q_ref, k_ref, v_ref, w_ref, r_ref, o_ref, *, n_head):
    _attn_body(q_ref, k_ref, v_ref, w_ref, r_ref, o_ref, None, n_head=n_head)


def fused_attention(qp, kp, vp, fc_w_t, residual, *, n_head, need_attn=True, tile_q=None):
    """qp/residual: (B, Nq, C); kp/vp: (B, Nk, C); fc_w_t: (C, C)."""
    B, Nq, C = qp.shape
    Nk = kp.shape[1]
    itemsize = jnp.dtype(qp.dtype).itemsize
    limit = _vmem_limit_bytes()
    TQ = tile_q or _attn_tile_q(B, Nq, Nk, C, n_head, itemsize, need_attn,
                                int(limit * 0.75))
    grid = (B, Nq // TQ)
    cparams = pltpu.CompilerParams(
        dimension_semantics=("parallel", "parallel"),
        vmem_limit_bytes=limit)

    def run(single_buffer):
        def inv_spec(shape, imap):
            # K, V, fc are invariant along the inner q-tile axis: single-buffer them
            # (halves their VMEM footprint; no pipelining benefit lost).
            if single_buffer:
                return pl.BlockSpec(shape, imap, pipeline_mode=pl.Buffered(1))
            return pl.BlockSpec(shape, imap)

        in_specs = [
            pl.BlockSpec((1, TQ, C), lambda b, i: (b, i, 0)),   # q tile
            inv_spec((1, Nk, C), lambda b, i: (b, 0, 0)),       # full K
            inv_spec((1, Nk, C), lambda b, i: (b, 0, 0)),       # full V
            inv_spec((C, C), lambda b, i: (0, 0)),              # fc weight
            pl.BlockSpec((1, TQ, C), lambda b, i: (b, i, 0)),   # residual tile
        ]
        out_spec_o = pl.BlockSpec((1, TQ, C), lambda b, i: (b, i, 0))

        if need_attn:
            kern = functools.partial(_attn_kernel_with_attn, n_head=n_head)
            out, attn = pl.pallas_call(
                kern,
                out_shape=(
                    jax.ShapeDtypeStruct((B, Nq, C), qp.dtype),
                    jax.ShapeDtypeStruct((B, n_head, Nq, Nk), qp.dtype),
                ),
                grid=grid,
                in_specs=in_specs,
                out_specs=(
                    out_spec_o,
                    pl.BlockSpec((1, n_head, TQ, Nk), lambda b, i: (b, 0, i, 0)),
                ),
                compiler_params=cparams,
            )(qp, kp, vp, fc_w_t, residual)
            return out, attn

        kern = functools.partial(_attn_kernel_no_attn, n_head=n_head)
        out = pl.pallas_call(
            kern,
            out_shape=jax.ShapeDtypeStruct((B, Nq, C), qp.dtype),
            grid=grid,
            in_specs=in_specs,
            out_specs=out_spec_o,
            compiler_params=cparams,
        )(qp, kp, vp, fc_w_t, residual)
        return out, None

    try:
        return run(True)
    except Exception:
        # TODO(synk): this jax/libtpu rejected pl.Buffered(1) single-buffering; fall back
        # to default double buffering (costs VMEM headroom only, results identical).
        return run(False)


# ---------------------------------------------------------------------------
# Module wrapper (eval mode)
# ---------------------------------------------------------------------------
def kaiming_uniform(key, shape):
    # shape = (out_dim, in_dim); kaiming_uniform bound = sqrt(6 / fan_in)
    # NOTE: PyG's default differs slightly; params are inputs, kernel math is identical.
    fan_in = shape[1]
    bound = math.sqrt(6.0 / fan_in)
    return jax.random.uniform(key, shape, jnp.float32, -bound, bound)


def init_mha_params(key, channels):
    ks = jax.random.split(key, 4)
    return {
        "w_qs": kaiming_uniform(ks[0], (channels, channels)),
        "w_ks": kaiming_uniform(ks[1], (channels, channels)),
        "w_vs": kaiming_uniform(ks[2], (channels, channels)),
        "fc":   kaiming_uniform(ks[3], (channels, channels)),
    }


def bga_multihead_attention(params, q, k, v, n_head, channels, mask=None,
                            need_attn=True):
    """Forward of BGALayer_MultiHeadAttention (eval mode; mask must be None).

    For peak MXU throughput on v6e/v7x pass bf16 inputs/params; softmax and
    accumulation stay in f32 inside the kernels.
    """
    assert mask is None  # TODO(synk): masked_fill path not implemented
    d = channels // n_head
    inv_temp = 1.0 / (float(d) ** 0.5)
    residual = q
    dt = q.dtype

    # PyTorch Linear: y = x @ W.T.  Fold 1/temperature into the q weight (trace time).
    wq = (params["w_qs"].astype(jnp.float32).T * inv_temp).astype(dt)
    wk = params["w_ks"].T.astype(dt)
    wv = params["w_vs"].T.astype(dt)

    # Projections: fuse reads + matmuls when inputs alias (BGA always calls with q = k = v).
    if (q is k) and (k is v):
        w_wide = jnp.concatenate([wq, wk, wv], axis=1)            # (C, 3C)
        qp, kp, vp = fused_linear(q, w_wide, (channels,) * 3)
    elif k is v:
        (qp,) = fused_linear(q, wq, (channels,))
        kp, vp = fused_linear(k, jnp.concatenate([wk, wv], axis=1), (channels, channels))
    else:
        (qp,) = fused_linear(q, wq, (channels,))
        (kp,) = fused_linear(k, wk, (channels,))
        (vp,) = fused_linear(v, wv, (channels,))

    # Fused attention + fc + residual (heads split/merged inside the kernel).
    out, attn = fused_attention(qp, kp, vp, params["fc"].T.astype(dt), residual,
                                n_head=n_head, need_attn=need_attn)
    return out, attn


# ---------------------------------------------------------------------------
# Pure-JAX reference (for correctness checking only)
# ---------------------------------------------------------------------------
def reference_mha(params, q, k, v, n_head):
    B, Nq, C = q.shape
    Nk = k.shape[1]
    D = C // n_head
    temperature = float(D) ** 0.5
    qp = q @ params["w_qs"].T
    kp = k @ params["w_ks"].T
    vp = v @ params["w_vs"].T
    qh = qp.reshape(B, Nq, n_head, D).transpose(0, 2, 1, 3)
    kh = kp.reshape(B, Nk, n_head, D).transpose(0, 2, 1, 3)
    vh = vp.reshape(B, Nk, n_head, D).transpose(0, 2, 1, 3)
    s = jnp.einsum("bhqd,bhkd->bhqk", qh / temperature, kh)
    attn = jax.nn.softmax(s, axis=-1)
    o = jnp.einsum("bhqk,bhkd->bhqd", attn, vh)
    o = o.transpose(0, 2, 1, 3).reshape(B, Nq, C)
    out = o @ params["fc"].T + q
    return out, attn


if __name__ == "__main__":
    # Small shapes consistent with the module (CoBFormer-ish: hidden=128, 4 heads).
    B, N, C, H = 2, 16, 128, 4

    key = jax.random.PRNGKey(0)
    k_param, k_x = jax.random.split(key)
    params = init_mha_params(k_param, C)
    x = jax.random.normal(k_x, (B, N, C), jnp.float32)

    # --- f32 self-attention path (how BGA uses the module: q = k = v), with attn ---
    out, attn = bga_multihead_attention(params, x, x, x, n_head=H, channels=C,
                                        need_attn=True)
    jax.block_until_ready(out)
    jax.block_until_ready(attn)
    assert out.shape == (B, N, C)
    assert attn.shape == (B, H, N, N)

    ref_out, ref_attn = reference_mha(params, x, x, x, H)
    assert bool(jnp.allclose(out, ref_out, rtol=2e-2, atol=2e-2)), (
        "out mismatch, max abs err=%f" % float(jnp.max(jnp.abs(out - ref_out))))
    assert bool(jnp.allclose(attn, ref_attn, rtol=2e-2, atol=2e-2)), (
        "attn mismatch, max abs err=%f" % float(jnp.max(jnp.abs(attn - ref_attn))))

    # --- bf16 path (MXU-friendly on v6e/v7x), attn writeback dropped (need_attn=False) ---
    params_bf16 = jax.tree_util.tree_map(lambda a: a.astype(jnp.bfloat16), params)
    x16 = x.astype(jnp.bfloat16)
    out16, attn16 = bga_multihead_attention(params_bf16, x16, x16, x16,
                                            n_head=H, channels=C, need_attn=False)
    jax.block_until_ready(out16)
    assert out16.shape == (B, N, C) and attn16 is None
    assert bool(jnp.isfinite(out16.astype(jnp.float32)).all())

    print("KERNEL_OK")
</pallas_src>

<mosaic_0001>
module attributes {stable_mosaic.version = 11 : i64} {
  func.func @kernel(%arg0: i32, %arg1: i32, %arg2: memref<1x16x128xf32, #tpu.memory_space<vmem>>, %arg3: memref<128x384xf32, #tpu.memory_space<vmem>>, %arg4: memref<1x16x128xf32, #tpu.memory_space<vmem>>, %arg5: memref<1x16x128xf32, #tpu.memory_space<vmem>>, %arg6: memref<1x16x128xf32, #tpu.memory_space<vmem>>) attributes {dimension_semantics = [#tpu.dimension_semantics<parallel>, #tpu.dimension_semantics<parallel>], iteration_bounds = array<i64: 2, 1>, scalar_prefetch = 0 : i64, scratch_operands = 0 : i64, tpu.core_type = #tpu.core_type<tc>, window_params = [{transform_indices = @transform_0, window_bounds = array<i64: 1, 16, 128>}, {pipeline_mode = #tpu.pipeline_mode<synchronous>, transform_indices = @transform_1, window_bounds = array<i64: 128, 384>}, {transform_indices = @transform_2, window_bounds = array<i64: 1, 16, 128>}, {transform_indices = @transform_3, window_bounds = array<i64: 1, 16, 128>}, {transform_indices = @transform_4, window_bounds = array<i64: 1, 16, 128>}]} {
    %c0 = arith.constant 0 : index
    %c0_0 = arith.constant 0 : index
    %c0_1 = arith.constant 0 : index
    %0 = vector.load %arg2[%c0, %c0_0, %c0_1] : memref<1x16x128xf32, #tpu.memory_space<vmem>>, vector<1x16x128xf32>
    %1 = vector.shape_cast %0 : vector<1x16x128xf32> to vector<16x128xf32>
    %c0_2 = arith.constant 0 : index
    %c0_3 = arith.constant 0 : index
    %2 = vector.load %arg3[%c0_2, %c0_3] : memref<128x384xf32, #tpu.memory_space<vmem>>, vector<128x384xf32>
    %cst = arith.constant dense<0.000000e+00> : vector<16x384xf32>
    %3 = tpu.matmul %1, %2, %cst {dimension_numbers = #tpu.dot_dimension_numbers<[1], [0], [0], [1], [0, 0, 1, 1], [], []>} : vector<16x128xf32>, vector<128x384xf32>, vector<16x384xf32> -> vector<16x384xf32>
    %4 = vector.extract_strided_slice %3 {offsets = [0, 0], sizes = [16, 128], strides = [1, 1]} : vector<16x384xf32> to vector<16x128xf32>
    %c0_4 = arith.constant 0 : index
    %c0_5 = arith.constant 0 : index
    %c0_6 = arith.constant 0 : index
    %5 = vector.load %arg4[%c0_4, %c0_5, %c0_6] : memref<1x16x128xf32, #tpu.memory_space<vmem>>, vector<1x16x128xf32>
    %6 = vector.shape_cast %5 : vector<1x16x128xf32> to vector<16x128xf32>
    %7 = vector.shape_cast %4 : vector<16x128xf32> to vector<1x16x128xf32>
    tpu.vector_store %arg4[%c0_4, %c0_5, %c0_6], %7 {strides = array<i32>} : memref<1x16x128xf32, #tpu.memory_space<vmem>>, vector<1x16x128xf32>,
    %8 = vector.extract_strided_slice %3 {offsets = [0, 128], sizes = [16, 128], strides = [1, 1]} : vector<16x384xf32> to vector<16x128xf32>
    %c0_7 = arith.constant 0 : index
    %c0_8 = arith.constant 0 : index
    %c0_9 = arith.constant 0 : index
    %9 = vector.load %arg5[%c0_7, %c0_8, %c0_9] : memref<1x16x128xf32, #tpu.memory_space<vmem>>, vector<1x16x128xf32>
    %10 = vector.shape_cast %9 : vector<1x16x128xf32> to vector<16x128xf32>
    %11 = vector.shape_cast %8 : vector<16x128xf32> to vector<1x16x128xf32>
    tpu.vector_store %arg5[%c0_7, %c0_8, %c0_9], %11 {strides = array<i32>} : memref<1x16x128xf32, #tpu.memory_space<vmem>>, vector<1x16x128xf32>,
    %12 = vector.extract_strided_slice %3 {offsets = [0, 256], sizes = [16, 128], strides = [1, 1]} : vector<16x384xf32> to vector<16x128xf32>
    %c0_10 = arith.constant 0 : index
    %c0_11 = arith.constant 0 : index
    %c0_12 = arith.constant 0 : index
    %13 = vector.load %arg6[%c0_10, %c0_11, %c0_12] : memref<1x16x128xf32, #tpu.memory_space<vmem>>, vector<1x16x128xf32>
    %14 = vector.shape_cast %13 : vector<1x16x128xf32> to vector<16x128xf32>
    %15 = vector.shape_cast %12 : vector<16x128xf32> to vector<1x16x128xf32>
    tpu.vector_store %arg6[%c0_10, %c0_11, %c0_12], %15 {strides = array<i32>} : memref<1x16x128xf32, #tpu.memory_space<vmem>>, vector<1x16x128xf32>,
    return
  }
  func.func @transform_0(%arg0: i32, %arg1: i32) -> (i32, i32, i32) {
    %c0_i32 = arith.constant 0 : i32
    %c0_i32_0 = arith.constant 0 : i32
    return %arg0, %arg1, %c0_i32 : i32, i32, i32
  }
  func.func @transform_1(%arg0: i32, %arg1: i32) -> (i32, i32) {
    %c0_i32 = arith.constant 0 : i32
    %c0_i32_0 = arith.constant 0 : i32
    %c0_i32_1 = arith.constant 0 : i32
    return %c0_i32, %c0_i32_0 : i32, i32
  }
  func.func @transform_2(%arg0: i32, %arg1: i32) -> (i32, i32, i32) {
    %c0_i32 = arith.constant 0 : i32
    %c0_i32_0 = arith.constant 0 : i32
    return %arg0, %arg1, %c0_i32 : i32, i32, i32
  }
  func.func @transform_3(%arg0: i32, %arg1: i32) -> (i32, i32, i32) {
    %c0_i32 = arith.constant 0 : i32
    %c0_i32_0 = arith.constant 0 : i32
    return %arg0, %arg1, %c0_i32 : i32, i32, i32
  }
  func.func @transform_4(%arg0: i32, %arg1: i32) -> (i32, i32, i32) {
    %c0_i32 = arith.constant 0 : i32
    %c0_i32_0 = arith.constant 0 : i32
    return %arg0, %arg1, %c0_i32 : i32, i32, i32
  }
}

</mosaic_0001>

<llo_original>
// kernel: tpu_custom_call.1
$region0: #{tpu_custom_call.1}
  #allocation0 [shape = 'u32[]', space=smem, size = 0x4, offset = 0x4, fixed_abs, tag = 'smem constant byte address 0x4 - core index']
  #allocation1 [shape = 'u32[144,128]{1,0:T(1,128)}', space=vmem, size = 0x12000, scoped, tag = 'internal scratch']
  %s0 = inlined_call_operand.hbm [shape: f32[2,16,128], index: 0, kind: input, shape index: {}]
  %s1 = inlined_call_operand.hbm [shape: f32[128,384], index: 1, kind: input, shape index: {}]
  %s2 = inlined_call_operand.hbm [shape: f32[2,16,128], index: 2, kind: output, shape index: {0}]
  %s3 = inlined_call_operand.hbm [shape: f32[2,16,128], index: 3, kind: output, shape index: {1}]
  %s4 = inlined_call_operand.hbm [shape: f32[2,16,128], index: 4, kind: output, shape index: {2}]
  %5 = xla_tuple %s2, %s3, %s4
  %s6 = sld [smem:[#allocation0]]
  $region65: #{tpu_custom_call.1} parent=0
    _
  %s8 = ssub.s32 1, %s6
  %s9 = scalar_select 0, %s8, %s6
  $region1: #{tpu_custom_call.1} parent=0
    #allocation2 [shape = 'u8[16384]{0}', space=vmem, size = 0x4000, scoped, tag = 'input window, operand 0']
    #allocation3 [shape = 's32[2]{0}', space=sflag, size = 0x8, scoped, tag = 'scoped memory for tpu_custom_call.1']
    #allocation4 [shape = 's32[2]{0}', space=sflag, size = 0x8, scoped, tag = 'scoped memory for tpu_custom_call.1']
    #allocation5 [shape = 'u8[196608]{0}', space=vmem, size = 0x30000, scoped, tag = 'input window, operand 1, single buffered']
    #allocation6 [shape = 's32[1]{0}', space=sflag, size = 0x4, scoped, tag = 'scoped memory for tpu_custom_call.1']
    #allocation7 [shape = 'u8[16384]{0}', space=vmem, size = 0x4000, scoped, tag = 'output window, operand 0']
    #allocation8 [shape = 'u8[16384]{0}', space=vmem, size = 0x4000, scoped, tag = 'output window, operand 1']
    #allocation9 [shape = 's32[2]{0}', space=sflag, size = 0x8, scoped, tag = 'scoped memory for tpu_custom_call.1']
    #allocation10 [shape = 'u8[16384]{0}', space=vmem, size = 0x4000, scoped, tag = 'output window, operand 2']
    %10 = vsyncpa [#allocation3], 0
    %s11 = scalar_lea.sflag [#allocation3], 1
    %12 = vsyncpa %s11, 0
    %13 = vsyncpa [#allocation6], 0
    %14 = vsyncpa [#allocation4], 0
    %s15 = scalar_lea.sflag [#allocation4], 1
    %16 = vsyncpa %s15, 0
    %17 = vsyncpa [#allocation9], 0
    %s18 = scalar_lea.sflag [#allocation9], 1
    %19 = vsyncpa %s18, 0
    loop: start=0, step=1, limit=4
    $region2: #{tpu_custom_call.1} parent=1 // loop_pre_header
      _
    $region3: #{tpu_custom_call.1} parent=1 // loop_header
      %s21 = sphi 0, %s25
      %p22 = scmp.ge.s32.totalorder %s21, 4
      %s28 = sphi 0, %s40
      %s29 = sphi 0, %s36
      %s30 = sphi 0, %s28
      %s31 = sphi 0, %s29
      %s32 = sphi 0, %s30
      %s33 = sphi 0, %s31
      %s45 = sphi 0, %s47
      %s48 = sphi 0, %s45
      %s49 = sphi 0, %s48
      %s65 = sphi 0, %s49
      %s69 = sphi 0, %s69
      %s71 = sphi 0, %s69
      %s72 = sphi 0, %s71
      %s86 = sphi 0, %s72
      %s94 = sphi 0, %s96
      %s97 = sphi 0, %s94
      %s98 = sphi 0, %s97
      %s114 = sphi 0, %s98
      %s122 = sphi 0, %s124
      %s125 = sphi 0, %s122
      %s126 = sphi 0, %s125
      %s142 = sphi 0, %s126
      %s150 = sphi 0, %s152
      %s153 = sphi 0, %s150
      %s154 = sphi 0, %s153
      %s170 = sphi 0, %s154
    $region4: #{tpu_custom_call.1} parent=1 // loop_header_branch
      %24 = sbr.rel (%p22) target = $region8
    $region5: #{tpu_custom_call.1} parent=1 // loop_body
      %s26 = ssub.s32 %s21, 1
      %s27 = ssub.s32 %s21, 2
      %s34 = sadd.s32 1, %s29
      %p35 = scmp.ge.s32.totalorder %s34, 1
      %s36 = scalar_select %p35, 0, %s34
      %s37 = sadd.s32 1, %s28
      %s38 = scalar_select %p35, %s37, %s28
      %p39 = scmp.ge.s32.totalorder %s38, 2
      %s40 = scalar_select %p39, 0, %s38
      %s41 = ssub.s32 %s28, %s40
      %s42 = ssub.s32 %s29, %s36
      %s43 = sor.u32 %s41, %s42
      %p44 = scmp.eq.s32.totalorder %s43, 0
      %s46 = sadd.s32 %s45, 1
      %s47 = scalar_select %p44, %s45, %s46
      %p50 = pneg %p44
      %p51 = scmp.eq.s32.totalorder %s21, 1
      %p52 = por %p50, %p51
      %p53 = scmp.ne.s32.totalorder %s45, %s48
      %p54 = scmp.eq.s32.totalorder %s21, 0
      %p55 = por %p53, %p54
      %p56 = scmp.ne.s32.totalorder %s45, %s48
      %p57 = scmp.eq.s32.totalorder %s26, 1
      %p58 = por %p56, %p57
      %p59 = scmp.ne.s32.totalorder %s48, %s49
      %p60 = scmp.eq.s32.totalorder %s26, 0
      %p61 = por %p59, %p60
      %p62 = scmp.ne.s32.totalorder %s48, %s49
      %p63 = scmp.eq.s32.totalorder %s27, 1
      %p64 = por %p62, %p63
      %p66 = scmp.ne.s32.totalorder %s49, %s65
      %p67 = scmp.eq.s32.totalorder %s27, 0
      %p68 = por %p66, %p67
      %s70 = sadd.s32 %s69, 1
      %p73 = scmp.eq.s32.totalorder %s21, 1
      %p74 = scmp.ne.s32.totalorder %s69, %s71
      %p75 = scmp.eq.s32.totalorder %s21, 0
      %p76 = por %p74, %p75
      %p77 = scmp.ne.s32.totalorder %s69, %s71
      %p78 = scmp.eq.s32.totalorder %s26, 1
      %p79 = por %p77, %p78
      %p80 = scmp.ne.s32.totalorder %s71, %s72
      %p81 = scmp.eq.s32.totalorder %s26, 0
      %p82 = por %p80, %p81
      %p83 = scmp.ne.s32.totalorder %s71, %s72
      %p84 = scmp.eq.s32.totalorder %s27, 1
      %p85 = por %p83, %p84
      %p87 = scmp.ne.s32.totalorder %s72, %s86
      %p88 = scmp.eq.s32.totalorder %s27, 0
      %p89 = por %p87, %p88
      %s90 = ssub.s32 %s28, %s40
      %s91 = ssub.s32 %s29, %s36
      %s92 = sor.u32 %s90, %s91
      %p93 = scmp.eq.s32.totalorder %s92, 0
      %s95 = sadd.s32 %s94, 1
      %s96 = scalar_select %p93, %s94, %s95
      %p99 = pneg %p93
      %p100 = scmp.eq.s32.totalorder %s21, 1
      %p101 = por %p99, %p100
      %p102 = scmp.ne.s32.totalorder %s94, %s97
      %p103 = scmp.eq.s32.totalorder %s21, 0
      %p104 = por %p102, %p103
      %p105 = scmp.ne.s32.totalorder %s94, %s97
      %p106 = scmp.eq.s32.totalorder %s26, 1
      %p107 = por %p105, %p106
      %p108 = scmp.ne.s32.totalorder %s97, %s98
      %p109 = scmp.eq.s32.totalorder %s26, 0
      %p110 = por %p108, %p109
      %p111 = scmp.ne.s32.totalorder %s97, %s98
      %p112 = scmp.eq.s32.totalorder %s27, 1
      %p113 = por %p111, %p112
      %p115 = scmp.ne.s32.totalorder %s98, %s114
      %p116 = scmp.eq.s32.totalorder %s27, 0
      %p117 = por %p115, %p116
      %s118 = ssub.s32 %s28, %s40
      %s119 = ssub.s32 %s29, %s36
      %s120 = sor.u32 %s118, %s119
      %p121 = scmp.eq.s32.totalorder %s120, 0
      %s123 = sadd.s32 %s122, 1
      %s124 = scalar_select %p121, %s122, %s123
      %p127 = pneg %p121
      %p128 = scmp.eq.s32.totalorder %s21, 1
      %p129 = por %p127, %p128
      %p130 = scmp.ne.s32.totalorder %s122, %s125
      %p131 = scmp.eq.s32.totalorder %s21, 0
      %p132 = por %p130, %p131
      %p133 = scmp.ne.s32.totalorder %s122, %s125
      %p134 = scmp.eq.s32.totalorder %s26, 1
      %p135 = por %p133, %p134
      %p136 = scmp.ne.s32.totalorder %s125, %s126
      %p137 = scmp.eq.s32.totalorder %s26, 0
      %p138 = por %p136, %p137
      %p139 = scmp.ne.s32.totalorder %s125, %s126
      %p140 = scmp.eq.s32.totalorder %s27, 1
      %p141 = por %p139, %p140
      %p143 = scmp.ne.s32.totalorder %s126, %s142
      %p144 = scmp.eq.s32.totalorder %s27, 0
      %p145 = por %p143, %p144
      %s146 = ssub.s32 %s28, %s40
      %s147 = ssub.s32 %s29, %s36
      %s148 = sor.u32 %s146, %s147
      %p149 = scmp.eq.s32.totalorder %s148, 0
      %s151 = sadd.s32 %s150, 1
      %s152 = scalar_select %p149, %s150, %s151
      %p155 = pneg %p149
      %p156 = scmp.eq.s32.totalorder %s21, 1
      %p157 = por %p155, %p156
      %p158 = scmp.ne.s32.totalorder %s150, %s153
      %p159 = scmp.eq.s32.totalorder %s21, 0
      %p160 = por %p158, %p159
      %p161 = scmp.ne.s32.totalorder %s150, %s153
      %p162 = scmp.eq.s32.totalorder %s26, 1
      %p163 = por %p161, %p162
      %p164 = scmp.ne.s32.totalorder %s153, %s154
      %p165 = scmp.eq.s32.totalorder %s26, 0
      %p166 = por %p164, %p165
      %p167 = scmp.ne.s32.totalorder %s153, %s154
      %p168 = scmp.eq.s32.totalorder %s27, 1
      %p169 = por %p167, %p168
      %p171 = scmp.ne.s32.totalorder %s154, %s170
      %p172 = scmp.eq.s32.totalorder %s27, 0
      %p173 = por %p171, %p172
      %p174 = scmp.le.s32.totalorder 1, %s21
      %p175 = scmp.lt.s32.totalorder %s21, 3
      %p176 = pnand %p174, %p175
      %p177 = pneg %p176
      // Predicated region
      $region9: #{tpu_custom_call.1} parent=5 // pred_check
        _
      $region10: #{tpu_custom_call.1} parent=5 // pred_check_branch
        %179 = sbr.rel (%p176) target = $region12
      $region11: #{tpu_custom_call.1} parent=5 // pred_region
        %s180 = ssub.s32 %s21, 1
        // Predicated region
        $region13: #{tpu_custom_call.1} parent=11 // pred_check
          %p181 = pneg %p82
        $region14: #{tpu_custom_call.1} parent=11 // pred_check_branch
          %183 = sbr.rel (%p181) target = $region16
        $region15: #{tpu_custom_call.1} parent=11 // pred_region
          %s185 = ssub.s32 6144, 6144
          %186 = vsyncadd [#allocation6], %s185
          %s187 = sshll.u32 [#allocation5], 4
          %s188 = int_to_ptr.vmem [resolvable:$true] %s187
          %193 = dma.hbm_to_vmem [thread:$0]  %s1, 6144, %s188, [#allocation6], 384, 384, 24
        $region16: #{tpu_custom_call.1} parent=11 // pred_fallthru
          _
      $region12: #{tpu_custom_call.1} parent=5 // pred_fallthru
        _
      %p194 = scmp.lt.s32.totalorder %s21, 2
      // Predicated region
      $region17: #{tpu_custom_call.1} parent=5 // pred_check
        %p195 = pneg %p194
      $region18: #{tpu_custom_call.1} parent=5 // pred_check_branch
        %197 = sbr.rel (%p195) target = $region20
      $region19: #{tpu_custom_call.1} parent=5 // pred_region
        // Predicated region
        $region21: #{tpu_custom_call.1} parent=19 // pred_check
          %p198 = pneg %p55
        $region22: #{tpu_custom_call.1} parent=19 // pred_check_branch
          %200 = sbr.rel (%p198) target = $region24
        $region23: #{tpu_custom_call.1} parent=19 // pred_region
          %s201 = sand.u32 %s45, 1
          %s202 = scalar_lea.sflag [#allocation3], %s201
          %s203 = sand.u32 %s45, 1
          %s204 = smul.addr %s203, 16
          %s205 = scalar_lea.vmem [#allocation2], %s204
          %s206 = smul.u32 2, %s29
          %s208 = ssub.s32 256, 256
          %209 = vsyncadd %s202, %s208
          %s210 = smul.addr %s28, 2
          %s211 = sadd.s32 %s206, %s210
          %s212 = smul.addr %s211, 128
          %s213 = scalar_lea.hbm %s0, %s212
          %s214 = sshll.u32 %s205, 4
          %s215 = int_to_ptr.vmem [resolvable:$true] %s214
          %220 = dma.hbm_to_vmem [thread:$0]  %s213, 256, %s215, %s202, 128, 128, 8
        $region24: #{tpu_custom_call.1} parent=19 // pred_fallthru
          _
      $region20: #{tpu_custom_call.1} parent=5 // pred_fallthru
        _
      %p221 = scmp.le.s32.totalorder 1, %s21
      %p222 = scmp.lt.s32.totalorder %s21, 3
      %p223 = pnand %p221, %p222
      %p224 = pneg %p223
      // Predicated region
      $region25: #{tpu_custom_call.1} parent=5 // pred_check
        _
      $region26: #{tpu_custom_call.1} parent=5 // pred_check_branch
        %226 = sbr.rel (%p223) target = $region28
      $region27: #{tpu_custom_call.1} parent=5 // pred_region
        %s227 = ssub.s32 %s21, 1
        %s228 = sand.u32 %s48, 1
        %s229 = scalar_lea.sflag [#allocation3], %s228
        %s230 = sand.u32 %s48, 1
        %s231 = smul.addr %s230, 16
        %s232 = scalar_lea.vmem [#allocation2], %s231
        // Predicated region
        $region29: #{tpu_custom_call.1} parent=27 // pred_check
          %p233 = pneg %p61
        $region30: #{tpu_custom_call.1} parent=27 // pred_check_branch
          %235 = sbr.rel (%p233) target = $region32
        $region31: #{tpu_custom_call.1} parent=27 // pred_region
          %236 = dma.done %s229, 256
        $region32: #{tpu_custom_call.1} parent=27 // pred_fallthru
          _
        // Predicated region
        $region33: #{tpu_custom_call.1} parent=27 // pred_check
          %p237 = pneg %p82
        $region34: #{tpu_custom_call.1} parent=27 // pred_check_branch
          %239 = sbr.rel (%p237) target = $region36
        $region35: #{tpu_custom_call.1} parent=27 // pred_region
          %240 = dma.done [#allocation6], 6144
        $region36: #{tpu_custom_call.1} parent=27 // pred_fallthru
          _
        %s241 = sand.u32 %s48, 1
        %s242 = scalar_lea.sflag [#allocation3], %s241
        %s243 = sand.u32 %s48, 1
        %s244 = smul.addr %s243, 16
        %s245 = scalar_lea.vmem [#allocation2], %s244
        %p246 = pneg %p61
        %p247 = pneg %p58
        %p248 = pneg %p82
        %p249 = pneg %p79
        %p250 = pneg %p110
        %p251 = pneg %p107
        %s252 = sand.u32 %s97, 1
        %s253 = scalar_lea.sflag [#allocation4], %s252
        %s254 = sand.u32 %s97, 1
        %s255 = smul.addr %s254, 16
        %s256 = scalar_lea.vmem [#allocation7], %s255
        %p257 = pneg %p138
        %p258 = pneg %p135
        %s259 = sand.u32 %s26, 1
        %s260 = scalar_lea.sflag [#allocation9], %s259
        %s261 = sand.u32 %s125, 1
        %s262 = smul.addr %s261, 16
        %s263 = scalar_lea.vmem [#allocation8], %s262
        %p264 = pneg %p166
        %p265 = pneg %p163
        %s266 = sand.u32 %s26, 1
        %s267 = scalar_lea.sflag [#allocation9], %s266
        %s268 = sand.u32 %s153, 1
        %s269 = smul.addr %s268, 16
        %s270 = scalar_lea.vmem [#allocation10], %s269
        %s271 = smul.u32 2, %s31
        %s272 = smul.u32 2, %s31
        %s273 = smul.u32 2, %s31
        %s274 = smul.u32 2, %s31
        %v275 = vld [vmem:[%s232] sm:$0xff]
        %v276 = vld [vmem:[%s232 + $0x8] sm:$0xff]
        %v277 = vld [vmem:[#allocation5] sm:$0xff]
        %v278 = vld [vmem:[#allocation5 + $0x8] sm:$0xff]
        %v279 = vld [vmem:[#allocation5 + $0x10] sm:$0xff]
        %v280 = vld [vmem:[#allocation5 + $0x18] sm:$0xff]
        %v281 = vld [vmem:[#allocation5 + $0x20] sm:$0xff]
        %v282 = vld [vmem:[#allocation5 + $0x28] sm:$0xff]
        %v283 = vld [vmem:[#allocation5 + $0x30] sm:$0xff]
        %v284 = vld [vmem:[#allocation5 + $0x38] sm:$0xff]
        %v285 = vld [vmem:[#allocation5 + $0x40] sm:$0xff]
        %v286 = vld [vmem:[#allocation5 + $0x48] sm:$0xff]
        %v287 = vld [vmem:[#allocation5 + $0x50] sm:$0xff]
        %v288 = vld [vmem:[#allocation5 + $0x58] sm:$0xff]
        %v289 = vld [vmem:[#allocation5 + $0x60] sm:$0xff]
        %v290 = vld [vmem:[#allocation5 + $0x68] sm:$0xff]
        %v291 = vld [vmem:[#allocation5 + $0x70] sm:$0xff]
        %v292 = vld [vmem:[#allocation5 + $0x78] sm:$0xff]
        %v293 = vld [vmem:[#allocation5 + $0x80] sm:$0xff]
        %v294 = vld [vmem:[#allocation5 + $0x88] sm:$0xff]
        %v295 = vld [vmem:[#allocation5 + $0x90] sm:$0xff]
        %v296 = vld [vmem:[#allocation5 + $0x98] sm:$0xff]
        %v297 = vld [vmem:[#allocation5 + $0xa0] sm:$0xff]
        %v298 = vld [vmem:[#allocation5 + $0xa8] sm:$0xff]
        %v299 = vld [vmem:[#allocation5 + $0xb0] sm:$0xff]
        %v300 = vld [vmem:[#allocation5 + $0xb8] sm:$0xff]
        %v301 = vld [vmem:[#allocation5 + $0xc0] sm:$0xff]
        %v302 = vld [vmem:[#allocation5 + $0xc8] sm:$0xff]
        %v303 = vld [vmem:[#allocation5 + $0xd0] sm:$0xff]
        %v304 = vld [vmem:[#allocation5 + $0xd8] sm:$0xff]
        %v305 = vld [vmem:[#allocation5 + $0xe0] sm:$0xff]
        %v306 = vld [vmem:[#allocation5 + $0xe8] sm:$0xff]
        %v307 = vld [vmem:[#allocation5 + $0xf0] sm:$0xff]
        %v308 = vld [vmem:[#allocation5 + $0xf8] sm:$0xff]
        %v309 = vld [vmem:[#allocation5 + $0x100] sm:$0xff]
        %v310 = vld [vmem:[#allocation5 + $0x108] sm:$0xff]
        %v311 = vld [vmem:[#allocation5 + $0x110] sm:$0xff]
        %v312 = vld [vmem:[#allocation5 + $0x118] sm:$0xff]
        %v313 = vld [vmem:[#allocation5 + $0x120] sm:$0xff]
        %v314 = vld [vmem:[#allocation5 + $0x128] sm:$0xff]
        %v315 = vld [vmem:[#allocation5 + $0x130] sm:$0xff]
        %v316 = vld [vmem:[#allocation5 + $0x138] sm:$0xff]
        %v317 = vld [vmem:[#allocation5 + $0x140] sm:$0xff]
        %v318 = vld [vmem:[#allocation5 + $0x148] sm:$0xff]
        %v319 = vld [vmem:[#allocation5 + $0x150] sm:$0xff]
        %v320 = vld [vmem:[#allocation5 + $0x158] sm:$0xff]
        %v321 = vld [vmem:[#allocation5 + $0x160] sm:$0xff]
        %v322 = vld [vmem:[#allocation5 + $0x168] sm:$0xff]
        %v323 = vld [vmem:[#allocation5 + $0x170] sm:$0xff]
        %v324 = vld [vmem:[#allocation5 + $0x178] sm:$0xff]
        %325 = vmatprep.subr.mxu0 %v278
        %326 = vmatpush1.msra.mxu0 %v277
        %327 = vmatprep.subr.mxu0 %v281
        %328 = vmatpush1.msra.mxu0 %v280
        %329 = vmatprep.subr.mxu0 %v284
        %330 = vmatpush1.msra.mxu0 %v283
        %331 = vmatprep.subr.mxu0 %v287
        %332 = vmatpush1.msra.mxu0 %v286
        %333 = vmatprep.subr.mxu0 %v290
        %334 = vmatpush1.msra.mxu0 %v289
        %335 = vmatprep.subr.mxu0 %v293
        %336 = vmatpush1.msra.mxu0 %v292
        %337 = vmatprep.subr.mxu0 %v296
        %338 = vmatpush1.msra.mxu0 %v295
        %339 = vmatprep.subr.mxu0 %v299
        %340 = vmatpush1.msra.mxu0 %v298
        %341 = vmatprep.subr.mxu0 %v302
        %342 = vmatpush1.msra.mxu0 %v301
        %343 = vmatprep.subr.mxu0 %v305
        %344 = vmatpush1.msra.mxu0 %v304
        %345 = vmatprep.subr.mxu0 %v308
        %346 = vmatpush1.msra.mxu0 %v307
        %347 = vmatprep.subr.mxu0 %v311
        %348 = vmatpush1.msra.mxu0 %v310
        %349 = vmatprep.subr.mxu0 %v314
        %350 = vmatpush1.msra.mxu0 %v313
        %351 = vmatprep.subr.mxu0 %v317
        %352 = vmatpush1.msra.mxu0 %v316
        %353 = vmatprep.subr.mxu0 %v320
        %354 = vmatpush1.msra.mxu0 %v319
        %355 = vmatprep.subr.mxu0 %v323
        %356 = vmatpush1.msra.mxu0 %v322
        %357 = vmatprep.subr.mxu0 0.0
        %358 = vmatpush1.msra.mxu0 0.0
        %359 = vmatprep.subr.mxu0 0.0
        %360 = vmatpush1.msra.mxu0 0.0
        %361 = vmatprep.subr.mxu0 0.0
        %362 = vmatpush1.msra.mxu0 0.0
        %363 = vmatprep.subr.mxu0 0.0
        %364 = vmatpush1.msra.mxu0 0.0
        %365 = vmatprep.subr.mxu0 0.0
        %366 = vmatpush1.msra.mxu0 0.0
        %367 = vmatprep.subr.mxu0 0.0
        %368 = vmatpush1.msra.mxu0 0.0
        %369 = vmatprep.subr.mxu0 0.0
        %370 = vmatpush1.msra.mxu0 0.0
        %371 = vmatprep.subr.mxu0 0.0
        %372 = vmatpush1.msra.mxu0 0.0
        %373 = vmatprep.subr.mxu0 0.0
        %374 = vmatpush1.msra.mxu0 0.0
        %375 = vmatprep.subr.mxu0 0.0
        %376 = vmatpush1.msra.mxu0 0.0
        %377 = vmatprep.subr.mxu0 0.0
        %378 = vmatpush1.msra.mxu0 0.0
        %379 = vmatprep.subr.mxu0 0.0
        %380 = vmatpush1.msra.mxu0 0.0
        %381 = vmatprep.subr.mxu0 0.0
        %382 = vmatpush1.msra.mxu0 0.0
        %383 = vmatprep.subr.mxu0 0.0
        %384 = vmatpush1.msra.mxu0 0.0
        %385 = vmatprep.subr.mxu0 0.0
        %386 = vmatpush1.msra.mxu0 0.0
        %387 = vmatprep.subr.mxu0 0.0
        %388 = vmatpush1.msra.mxu0 0.0
        %389 = vmatprep.mubr.f32.mxu0 0.0
        %390 = vmatmul.mubr.f32.gmra.mrb[0].mxu0 %v275
        %v391 = vpop.f32.mrb[0].mxu0
        %v392 = vadd.f32 0.0, %v391
        %v393 = vpop.f32.mrb[0].mxu0
        %v394 = vadd.f32 0.0, %v393
        %395 = vmatprep.mubr.f32.mxu0 0.0
        %396 = vmatmul.mubr.f32.gmra.mrb[0].mxu0 %v276
        %v397 = vpop.f32.mrb[0].mxu0
        %v398 = vadd.f32 0.0, %v397
        %v399 = vpop.f32.mrb[0].mxu0
        %v400 = vadd.f32 0.0, %v399
        %401 = vdwg.mxu0
        %402 = vmatprep.subr.mxu0 0.0
        %403 = vmatpush1.msra.mxu0 %v279
        %404 = vmatprep.subr.mxu0 0.0
        %405 = vmatpush1.msra.mxu0 %v282
        %406 = vmatprep.subr.mxu0 0.0
        %407 = vmatpush1.msra.mxu0 %v285
        %408 = vmatprep.subr.mxu0 0.0
        %409 = vmatpush1.msra.mxu0 %v288
        %410 = vmatprep.subr.mxu0 0.0
        %411 = vmatpush1.msra.mxu0 %v291
        %412 = vmatprep.subr.mxu0 0.0
        %413 = vmatpush1.msra.mxu0 %v294
        %414 = vmatprep.subr.mxu0 0.0
        %415 = vmatpush1.msra.mxu0 %v297
        %416 = vmatprep.subr.mxu0 0.0
        %417 = vmatpush1.msra.mxu0 %v300
        %418 = vmatprep.subr.mxu0 0.0
        %419 = vmatpush1.msra.mxu0 %v303
        %420 = vmatprep.subr.mxu0 0.0
        %421 = vmatpush1.msra.mxu0 %v306
        %422 = vmatprep.subr.mxu0 0.0
        %423 = vmatpush1.msra.mxu0 %v309
        %424 = vmatprep.subr.mxu0 0.0
        %425 = vmatpush1.msra.mxu0 %v312
        %426 = vmatprep.subr.mxu0 0.0
        %427 = vmatpush1.msra.mxu0 %v315
        %428 = vmatprep.subr.mxu0 0.0
        %429 = vmatpush1.msra.mxu0 %v318
        %430 = vmatprep.subr.mxu0 0.0
        %431 = vmatpush1.msra.mxu0 %v321
        %432 = vmatprep.subr.mxu0 0.0
        %433 = vmatpush1.msra.mxu0 %v324
        %434 = vmatprep.subr.mxu0 0.0
        %435 = vmatpush1.msra.mxu0 0.0
        %436 = vmatprep.subr.mxu0 0.0
        %437 = vmatpush1.msra.mxu0 0.0
        %438 = vmatprep.subr.mxu0 0.0
        %439 = vmatpush1.msra.mxu0 0.0
        %440 = vmatprep.subr.mxu0 0.0
        %441 = vmatpush1.msra.mxu0 0.0
        %442 = vmatprep.subr.mxu0 0.0
        %443 = vmatpush1.msra.mxu0 0.0
        %444 = vmatprep.subr.mxu0 0.0
        %445 = vmatpush1.msra.mxu0 0.0
        %446 = vmatprep.subr.mxu0 0.0
        %447 = vmatpush1.msra.mxu0 0.0
        %448 = vmatprep.subr.mxu0 0.0
        %449 = vmatpush1.msra.mxu0 0.0
        %450 = vmatprep.subr.mxu0 0.0
        %451 = vmatpush1.msra.mxu0 0.0
        %452 = vmatprep.subr.mxu0 0.0
        %453 = vmatpush1.msra.mxu0 0.0
        %454 = vmatprep.subr.mxu0 0.0
        %455 = vmatpush1.msra.mxu0 0.0
        %456 = vmatprep.subr.mxu0 0.0
        %457 = vmatpush1.msra.mxu0 0.0
        %458 = vmatprep.subr.mxu0 0.0
        %459 = vmatpush1.msra.mxu0 0.0
        %460 = vmatprep.subr.mxu0 0.0
        %461 = vmatpush1.msra.mxu0 0.0
        %462 = vmatprep.subr.mxu0 0.0
        %463 = vmatpush1.msra.mxu0 0.0
        %464 = vmatprep.subr.mxu0 0.0
        %465 = vmatpush1.msra.mxu0 0.0
        %466 = vmatprep.mubr.f32.mxu0 0.0
        %467 = vmatmul.mubr.f32.gmra.mrb[0].mxu0 %v275
        %v468 = vpop.f32.mrb[0].mxu0
        %v469 = vadd.f32 0.0, %v468
        %v470 = vpop.f32.mrb[0].mxu0
        %471 = vmatprep.mubr.f32.mxu0 0.0
        %472 = vmatmul.mubr.f32.gmra.mrb[0].mxu0 %v276
        %v473 = vpop.f32.mrb[0].mxu0
        %v474 = vadd.f32 0.0, %v473
        %v475 = vpop.f32.mrb[0].mxu0
        %476 = vdwg.mxu0
        %477 = vst [vmem:[%s256] sm:$0xff] %v392
        %478 = vst [vmem:[%s256 + $0x8] sm:$0xff] %v398
        %479 = vst [vmem:[%s263] sm:$0xff] %v394
        %480 = vst [vmem:[%s263 + $0x8] sm:$0xff] %v400
        %481 = vst [vmem:[%s270] sm:$0xff] %v469
        %482 = vst [vmem:[%s270 + $0x8] sm:$0xff] %v474
        %s483 = sand.u32 %s97, 1
        %s484 = scalar_lea.sflag [#allocation4], %s483
        %s485 = sand.u32 %s97, 1
        %s486 = smul.addr %s485, 16
        %s487 = scalar_lea.vmem [#allocation7], %s486
        %s488 = sand.u32 %s26, 1
        %s489 = scalar_lea.sflag [#allocation9], %s488
        %s490 = sand.u32 %s125, 1
        %s491 = smul.addr %s490, 16
        %s492 = scalar_lea.vmem [#allocation8], %s491
        %s493 = sand.u32 %s26, 1
        %s494 = scalar_lea.sflag [#allocation9], %s493
        %s495 = sand.u32 %s153, 1
        %s496 = smul.addr %s495, 16
        %s497 = scalar_lea.vmem [#allocation10], %s496
        // Predicated region
        $region37: #{tpu_custom_call.1} parent=27 // pred_check
          %p498 = pneg %p107
        $region38: #{tpu_custom_call.1} parent=27 // pred_check_branch
          %500 = sbr.rel (%p498) target = $region40
        $region39: #{tpu_custom_call.1} parent=27 // pred_region
          %s501 = smul.u32 2, %s31
          %s503 = ssub.s32 256, 256
          %504 = vsyncadd %s484, %s503
          %s505 = smul.addr %s30, 2
          %s506 = sadd.s32 %s501, %s505
          %s507 = smul.addr %s506, 128
          %s508 = scalar_lea.hbm %s2, %s507
          %s509 = sshll.u32 %s487, 4
          %s510 = int_to_ptr.vmem [resolvable:$true] %s509
          %515 = dma.vmem_to_hbm [thread:$0]  %s510, 256, %s508, %s484, 128, 128, 8
        $region40: #{tpu_custom_call.1} parent=27 // pred_fallthru
          _
        // Predicated region
        $region41: #{tpu_custom_call.1} parent=27 // pred_check
          %p516 = pneg %p135
        $region42: #{tpu_custom_call.1} parent=27 // pred_check_branch
          %518 = sbr.rel (%p516) target = $region44
        $region43: #{tpu_custom_call.1} parent=27 // pred_region
          %s519 = smul.u32 2, %s31
          %s521 = ssub.s32 256, 256
          %522 = vsyncadd %s489, %s521
          %s523 = smul.addr %s30, 2
          %s524 = sadd.s32 %s519, %s523
          %s525 = smul.addr %s524, 128
          %s526 = scalar_lea.hbm %s3, %s525
          %s527 = sshll.u32 %s492, 4
          %s528 = int_to_ptr.vmem [resolvable:$true] %s527
          %533 = dma.vmem_to_hbm [thread:$0]  %s528, 256, %s526, %s489, 128, 128, 8
        $region44: #{tpu_custom_call.1} parent=27 // pred_fallthru
          _
        // Predicated region
        $region45: #{tpu_custom_call.1} parent=27 // pred_check
          %p534 = pneg %p163
        $region46: #{tpu_custom_call.1} parent=27 // pred_check_branch
          %536 = sbr.rel (%p534) target = $region48
        $region47: #{tpu_custom_call.1} parent=27 // pred_region
          %s537 = smul.u32 2, %s31
          %s539 = ssub.s32 256, 256
          %540 = vsyncadd %s494, %s539
          %s541 = smul.addr %s30, 2
          %s542 = sadd.s32 %s537, %s541
          %s543 = smul.addr %s542, 128
          %s544 = scalar_lea.hbm %s4, %s543
          %s545 = sshll.u32 %s497, 4
          %s546 = int_to_ptr.vmem [resolvable:$true] %s545
          %551 = dma.vmem_to_hbm [thread:$0]  %s546, 256, %s544, %s494, 128, 128, 8
        $region48: #{tpu_custom_call.1} parent=27 // pred_fallthru
          _
      $region28: #{tpu_custom_call.1} parent=5 // pred_fallthru
        _
      %p552 = scmp.le.s32.totalorder 2, %s21
      // Predicated region
      $region49: #{tpu_custom_call.1} parent=5 // pred_check
        %p553 = pneg %p552
      $region50: #{tpu_custom_call.1} parent=5 // pred_check_branch
        %555 = sbr.rel (%p553) target = $region52
      $region51: #{tpu_custom_call.1} parent=5 // pred_region
        %s556 = ssub.s32 %s21, 2
        // Predicated region
        $region53: #{tpu_custom_call.1} parent=51 // pred_check
          %p557 = pneg %p113
        $region54: #{tpu_custom_call.1} parent=51 // pred_check_branch
          %559 = sbr.rel (%p557) target = $region56
        $region55: #{tpu_custom_call.1} parent=51 // pred_region
          %s560 = sand.u32 %s98, 1
          %s561 = scalar_lea.sflag [#allocation4], %s560
          %s562 = sand.u32 %s98, 1
          %s563 = smul.addr %s562, 16
          %s564 = scalar_lea.vmem [#allocation7], %s563
          %565 = dma.done %s561, 256
        $region56: #{tpu_custom_call.1} parent=51 // pred_fallthru
          _
        // Predicated region
        $region57: #{tpu_custom_call.1} parent=51 // pred_check
          %p566 = pneg %p141
        $region58: #{tpu_custom_call.1} parent=51 // pred_check_branch
          %568 = sbr.rel (%p566) target = $region60
        $region59: #{tpu_custom_call.1} parent=51 // pred_region
          %s569 = sand.u32 %s27, 1
          %s570 = scalar_lea.sflag [#allocation9], %s569
          %s571 = sand.u32 %s126, 1
          %s572 = smul.addr %s571, 16
          %s573 = scalar_lea.vmem [#allocation8], %s572
          %574 = dma.done %s570, 256
        $region60: #{tpu_custom_call.1} parent=51 // pred_fallthru
          _
        // Predicated region
        $region61: #{tpu_custom_call.1} parent=51 // pred_check
          %p575 = pneg %p169
        $region62: #{tpu_custom_call.1} parent=51 // pred_check_branch
          %577 = sbr.rel (%p575) target = $region64
        $region63: #{tpu_custom_call.1} parent=51 // pred_region
          %s578 = sand.u32 %s27, 1
          %s579 = scalar_lea.sflag [#allocation9], %s578
          %s580 = sand.u32 %s154, 1
          %s581 = smul.addr %s580, 16
          %s582 = scalar_lea.vmem [#allocation10], %s581
          %583 = dma.done %s579, 256
        $region64: #{tpu_custom_call.1} parent=51 // pred_fallthru
          _
      $region52: #{tpu_custom_call.1} parent=5 // pred_fallthru
        _
    $region6: #{tpu_custom_call.1} parent=1 // loop_footer
      %s25 = sadd.s32 1, %s21
    $region7: #{tpu_custom_call.1} parent=1 // loop_footer_branch
      %20 = sbr.rel target = $region3
    $region8: #{tpu_custom_call.1} parent=1 // loop_exit
      _
    %584 = vsyncpa [#allocation3], 1
    %s585 = scalar_lea.sflag [#allocation3], 1
    %586 = vsyncpa %s585, 1
    %587 = vsyncpa [#allocation6], 1
    %588 = vsyncpa [#allocation4], 1
    %s589 = scalar_lea.sflag [#allocation4], 1
    %590 = vsyncpa %s589, 1
    %591 = vsyncpa [#allocation9], 1
    %s592 = scalar_lea.sflag [#allocation9], 1
    %593 = vsyncpa %s592, 1

</llo_original>
